<compile_context>
chip_gen: v7x
topology: tpu7x:2x2x1
jax: 0.10.0
libtpu: 0.0.40
codegen_flags: <defaults>
</compile_context>

<pallas_src>
import functools

import jax
import jax.numpy as jnp
from jax import lax
from jax.experimental import pallas as pl
from jax.experimental.pallas import tpu as pltpu


def _pointwise(w, h, use_mxu):
    """out[o, p] = sum_c w[o, c] * h[c, p];  w: (C,C), h: (C, NL)."""
    if use_mxu:
        # Production channel counts: one lane-dense MXU matmul.
        # (cast w/h to bf16 here on v6e/v7x for large C if desired.)
        return jnp.dot(w, h, preferred_element_type=jnp.float32)
    # Tiny C: C broadcasted VPU FMAs (exact f32, avoids MXU push/pop latency).
    c_in = h.shape[0]
    acc = w[:, 0:1] * h[0:1, :]
    for c in range(1, c_in):
        acc = acc + w[:, c:c + 1] * h[c:c + 1, :]
    return acc


def _bn_fused(h, gamma, beta, eps, inv_n):
    """Single-pass training-mode BatchNorm: per-channel stats over the lane axis."""
    s1 = jnp.sum(h, axis=1, keepdims=True)
    s2 = jnp.sum(h * h, axis=1, keepdims=True)
    mean = s1 * inv_n
    var = s2 * inv_n - mean * mean
    a = gamma * lax.rsqrt(var + eps)
    b = beta - mean * a
    return h * a + b


def _quartz_kernel(K, eps, use_mxu,
                   mask_ref, x_ref, w_dw_ref, w_pw_ref, gamma_ref, beta_ref,
                   w_sk_ref, g_sk_ref, be_sk_ref,
                   o_ref, h_scratch):
    i = pl.program_id(0)
    last = pl.num_programs(0) - 1
    C, NL = h_scratch.shape
    pad = K // 2
    inv_n = 1.0 / NL

    @pl.when(i == 0)
    def _():
        h_scratch[...] = x_ref[...]

    h = h_scratch[...]                              # (C, NL) f32

    # --- depthwise Conv1d(groups=C, padding='same') as K shifted MACs ---
    w_dw = w_dw_ref[0]                              # (C, K)
    masks = mask_ref[...]                           # (K, NL) f32 {0,1}, hoisted
    acc = h * w_dw[:, pad:pad + 1]                  # centre tap: no shift, no mask
    for k in range(K):
        if k == pad:
            continue
        d = k - pad
        shifted = pltpu.roll(h, shift=(-d) % NL, axis=1)   # y[p] = h[p + d] (mod NL)
        acc = acc + shifted * w_dw[:, k:k + 1] * masks[k:k + 1, :]
    # NOTE: conv/pointwise biases are omitted — a per-channel constant is exactly
    # removed by the training-mode BatchNorm mean subtraction that follows.

    # --- pointwise 1x1 conv + fused BatchNorm ---
    h = _pointwise(w_pw_ref[0], acc, use_mxu)
    h_bn = _bn_fused(h, gamma_ref[0], beta_ref[0], eps, inv_n)

    @pl.when(i != last)
    def _():
        h_scratch[...] = jnp.maximum(h_bn, 0.0)     # ReLU between repeats

    @pl.when(i == last)
    def _():
        # skip branch: 1x1 conv + BN on the original input, then final ReLU.
        s = _pointwise(w_sk_ref[...], x_ref[...], use_mxu)
        s_bn = _bn_fused(s, g_sk_ref[...], be_sk_ref[...], eps, inv_n)
        o_ref[...] = jnp.maximum(h_bn + s_bn, 0.0)


def quartz_block(x, w_dw, b_dw, w_pw, b_pw, gamma, beta,
                 w_sk, b_sk, g_sk, be_sk, *, R, K, eps=1e-5):
    # Biases are mathematically cancelled by the training-mode BatchNorms.
    del b_dw, b_pw, b_sk
    N, C, L = x.shape
    NL = N * L
    pad = K // 2

    # (N, C, L) -> lane-dense (C, N*L): N*L on lanes (multiple of 128), C on sublanes.
    x2 = jnp.transpose(x, (1, 0, 2)).reshape(C, NL)

    # Hoisted zero-padding masks for the K shifted taps (depend only on L, K).
    l_idx = jnp.arange(NL, dtype=jnp.int32) % L
    mask = jnp.stack(
        [((l_idx + (k - pad) >= 0) & (l_idx + (k - pad) < L)).astype(jnp.float32)
         for k in range(K)])                        # (K, NL)

    use_mxu = C >= 128                              # tiny C -> VPU FMAs, big C -> MXU
    kernel = functools.partial(_quartz_kernel, K, eps, use_mxu)

    out2 = pl.pallas_call(
        kernel,
        out_shape=jax.ShapeDtypeStruct((C, NL), jnp.float32),
        grid_spec=pltpu.PrefetchScalarGridSpec(
            num_scalar_prefetch=0,
            grid=(R,),                              # one step per repeat
            in_specs=[
                pl.BlockSpec((K, NL), lambda i: (0, 0)),       # padding masks (resident)
                pl.BlockSpec((C, NL), lambda i: (0, 0)),       # input (resident)
                pl.BlockSpec((1, C, K), lambda i: (i, 0, 0)),  # depthwise weights (stream)
                pl.BlockSpec((1, C, C), lambda i: (i, 0, 0)),  # pointwise weights (stream)
                pl.BlockSpec((1, C, 1), lambda i: (i, 0, 0)),  # BN gamma (stream)
                pl.BlockSpec((1, C, 1), lambda i: (i, 0, 0)),  # BN beta (stream)
                pl.BlockSpec((C, C), lambda i: (0, 0)),        # skip weights
                pl.BlockSpec((C, 1), lambda i: (0, 0)),        # skip BN gamma
                pl.BlockSpec((C, 1), lambda i: (0, 0)),        # skip BN beta
            ],
            out_specs=pl.BlockSpec((C, NL), lambda i: (0, 0)),
            scratch_shapes=[pltpu.VMEM((C, NL), jnp.float32)], # resident activation
        ),
        compiler_params=pltpu.CompilerParams(
            dimension_semantics=("arbitrary",),     # repeats are strictly sequential
            vmem_limit_bytes=48 * 1024 * 1024,      # stays inside v7x's 64 MiB VMEM
        ),
    )(mask, x2, w_dw, w_pw, gamma, beta, w_sk, g_sk, be_sk)

    return out2.reshape(C, N, L).transpose(1, 0, 2)


# ----------------------------------------------------------------------------- #
# Pure-JAX reference (same math as the PyTorch forward, biases included,
# two-pass BatchNorm, highest precision).
# ----------------------------------------------------------------------------- #
def _batchnorm_train_ref(h, gamma, beta, eps):
    mean = jnp.mean(h, axis=(0, 2), keepdims=True)
    var = jnp.mean((h - mean) ** 2, axis=(0, 2), keepdims=True)
    return (h - mean) * lax.rsqrt(var + eps) * gamma + beta


def quartz_ref(x, w_dw, b_dw, w_pw, b_pw, gamma, beta,
               w_sk, b_sk, g_sk, be_sk, *, R, K, eps=1e-5):
    C = x.shape[1]
    hp = lax.Precision.HIGHEST
    h = x
    for i in range(R):
        h = lax.conv_general_dilated(
            h, w_dw[i][:, None, :], window_strides=(1,), padding='SAME',
            dimension_numbers=('NCH', 'OIH', 'NCH'),
            feature_group_count=C, precision=hp) + b_dw[i]
        h = jnp.einsum('oc,ncl->nol', w_pw[i], h, precision=hp) + b_pw[i]
        h = _batchnorm_train_ref(h, gamma[i], beta[i], eps)
        if i != R - 1:
            h = jnp.maximum(h, 0.0)
    s = jnp.einsum('oc,ncl->nol', w_sk, x, precision=hp) + b_sk
    s = _batchnorm_train_ref(s, g_sk, be_sk, eps)
    return jnp.maximum(h + s, 0.0)


if __name__ == "__main__":
    R, K = 2, 3                 # repeats within the block, depthwise kernel size
    N, C, L = 2, 8, 128         # batch, channels (in == out), time steps

    key = jax.random.PRNGKey(0)
    ks = jax.random.split(key, 11)
    f32 = jnp.float32

    x = jax.random.normal(ks[0], (N, C, L), f32)
    w_dw = 0.5 * jax.random.normal(ks[1], (R, C, K), f32)
    b_dw = 0.1 * jax.random.normal(ks[2], (R, C, 1), f32)
    w_pw = jax.random.normal(ks[3], (R, C, C), f32) / jnp.sqrt(C).astype(f32)
    b_pw = 0.1 * jax.random.normal(ks[4], (R, C, 1), f32)
    gamma = 1.0 + 0.1 * jax.random.normal(ks[5], (R, C, 1), f32)
    beta = 0.1 * jax.random.normal(ks[6], (R, C, 1), f32)
    w_sk = jax.random.normal(ks[7], (C, C), f32) / jnp.sqrt(C).astype(f32)
    b_sk = 0.1 * jax.random.normal(ks[8], (C, 1), f32)
    g_sk = 1.0 + 0.1 * jax.random.normal(ks[9], (C, 1), f32)
    be_sk = 0.1 * jax.random.normal(ks[10], (C, 1), f32)

    out = quartz_block(x, w_dw, b_dw, w_pw, b_pw, gamma, beta,
                       w_sk, b_sk, g_sk, be_sk, R=R, K=K)
    out = jax.block_until_ready(out)

    ref = quartz_ref(x, w_dw, b_dw, w_pw, b_pw, gamma, beta,
                     w_sk, b_sk, g_sk, be_sk, R=R, K=K)
    ref = jax.block_until_ready(ref)

    assert out.shape == (N, C, L) and out.dtype == jnp.float32
    max_err = float(jnp.max(jnp.abs(out - ref)))
    rel_err = max_err / (float(jnp.max(jnp.abs(ref))) + 1e-12)
    if not (rel_err < 5e-4):    # tightened from 5e-2 (all VPU math stays f32)
        raise AssertionError(
            f"kernel/reference mismatch: max abs err = {max_err}, rel err = {rel_err}")
    print("KERNEL_OK")
</pallas_src>

<mosaic_0001>
module attributes {stable_mosaic.version = 11 : i64} {
  func.func @_quartz_kernel(%arg0: i32, %arg1: memref<3x256xf32, #tpu.memory_space<vmem>>, %arg2: memref<8x256xf32, #tpu.memory_space<vmem>>, %arg3: memref<1x8x3xf32, #tpu.memory_space<vmem>>, %arg4: memref<1x8x8xf32, #tpu.memory_space<vmem>>, %arg5: memref<1x8x1xf32, #tpu.memory_space<vmem>>, %arg6: memref<1x8x1xf32, #tpu.memory_space<vmem>>, %arg7: memref<8x8xf32, #tpu.memory_space<vmem>>, %arg8: memref<8x1xf32, #tpu.memory_space<vmem>>, %arg9: memref<8x1xf32, #tpu.memory_space<vmem>>, %arg10: memref<8x256xf32, #tpu.memory_space<vmem>>, %arg11: memref<8x256xf32, #tpu.memory_space<vmem>>) attributes {dimension_semantics = [#tpu.dimension_semantics<arbitrary>], iteration_bounds = array<i64: 2>, scalar_prefetch = 0 : i64, scratch_operands = 1 : i64, tpu.core_type = #tpu.core_type<tc>, window_params = [{pipeline_mode = #tpu.pipeline_mode<synchronous>, transform_indices = @transform_0, window_bounds = array<i64: 3, 256>}, {pipeline_mode = #tpu.pipeline_mode<synchronous>, transform_indices = @transform_1, window_bounds = array<i64: 8, 256>}, {transform_indices = @transform_2, window_bounds = array<i64: 1, 8, 3>}, {transform_indices = @transform_3, window_bounds = array<i64: 1, 8, 8>}, {transform_indices = @transform_4, window_bounds = array<i64: 1, 8, 1>}, {transform_indices = @transform_5, window_bounds = array<i64: 1, 8, 1>}, {pipeline_mode = #tpu.pipeline_mode<synchronous>, transform_indices = @transform_6, window_bounds = array<i64: 8, 8>}, {pipeline_mode = #tpu.pipeline_mode<synchronous>, transform_indices = @transform_7, window_bounds = array<i64: 8, 1>}, {pipeline_mode = #tpu.pipeline_mode<synchronous>, transform_indices = @transform_8, window_bounds = array<i64: 8, 1>}, {pipeline_mode = #tpu.pipeline_mode<synchronous>, transform_indices = @transform_9, window_bounds = array<i64: 8, 256>}]} {
    %c0_i32 = arith.constant 0 : i32
    %0 = arith.cmpi eq, %arg0, %c0_i32 : i32
    %1 = arith.extui %0 : i1 to i32
    %c0_i32_0 = arith.constant 0 : i32
    %2 = arith.cmpi ne, %1, %c0_i32_0 : i32
    scf.if %2 {
      %c0_24 = arith.constant 0 : index
      %c0_25 = arith.constant 0 : index
      %106 = vector.load %arg2[%c0_24, %c0_25] : memref<8x256xf32, #tpu.memory_space<vmem>>, vector<8x256xf32>
      %c0_26 = arith.constant 0 : index
      %c0_27 = arith.constant 0 : index
      %107 = vector.load %arg11[%c0_26, %c0_27] : memref<8x256xf32, #tpu.memory_space<vmem>>, vector<8x256xf32>
      tpu.vector_store %arg11[%c0_26, %c0_27], %106 {strides = array<i32>} : memref<8x256xf32, #tpu.memory_space<vmem>>, vector<8x256xf32>,
    } else {
    }
    %c0 = arith.constant 0 : index
    %c0_1 = arith.constant 0 : index
    %3 = vector.load %arg11[%c0, %c0_1] : memref<8x256xf32, #tpu.memory_space<vmem>>, vector<8x256xf32>
    %c0_2 = arith.constant 0 : index
    %c0_3 = arith.constant 0 : index
    %c0_4 = arith.constant 0 : index
    %4 = vector.load %arg3[%c0_2, %c0_3, %c0_4] : memref<1x8x3xf32, #tpu.memory_space<vmem>>, vector<1x8x3xf32>
    %5 = vector.shape_cast %4 : vector<1x8x3xf32> to vector<8x3xf32>
    %c0_5 = arith.constant 0 : index
    %c0_6 = arith.constant 0 : index
    %6 = vector.load %arg1[%c0_5, %c0_6] : memref<3x256xf32, #tpu.memory_space<vmem>>, vector<3x256xf32>
    %7 = vector.extract_strided_slice %5 {offsets = [0, 1], sizes = [8, 1], strides = [1, 1]} : vector<8x3xf32> to vector<8x1xf32>
    %8 = vector.broadcast %7 : vector<8x1xf32> to vector<8x256xf32>
    %9 = arith.mulf %3, %8 : vector<8x256xf32>
    %c1_i32 = arith.constant 1 : i32
    %10 = tpu.dynamic_rotate %3 by %c1_i32 dim 1 : vector<8x256xf32>, i32 -> vector<8x256xf32>
    %11 = vector.extract_strided_slice %5 {offsets = [0, 0], sizes = [8, 1], strides = [1, 1]} : vector<8x3xf32> to vector<8x1xf32>
    %12 = vector.broadcast %11 : vector<8x1xf32> to vector<8x256xf32>
    %13 = arith.mulf %10, %12 : vector<8x256xf32>
    %14 = vector.extract_strided_slice %6 {offsets = [0, 0], sizes = [1, 256], strides = [1, 1]} : vector<3x256xf32> to vector<1x256xf32>
    %15 = vector.broadcast %14 : vector<1x256xf32> to vector<8x256xf32>
    %16 = arith.mulf %13, %15 : vector<8x256xf32>
    %17 = arith.addf %9, %16 : vector<8x256xf32>
    %c255_i32 = arith.constant 255 : i32
    %18 = tpu.dynamic_rotate %3 by %c255_i32 dim 1 : vector<8x256xf32>, i32 -> vector<8x256xf32>
    %19 = vector.extract_strided_slice %5 {offsets = [0, 2], sizes = [8, 1], strides = [1, 1]} : vector<8x3xf32> to vector<8x1xf32>
    %20 = vector.broadcast %19 : vector<8x1xf32> to vector<8x256xf32>
    %21 = arith.mulf %18, %20 : vector<8x256xf32>
    %22 = vector.extract_strided_slice %6 {offsets = [2, 0], sizes = [1, 256], strides = [1, 1]} : vector<3x256xf32> to vector<1x256xf32>
    %23 = vector.broadcast %22 : vector<1x256xf32> to vector<8x256xf32>
    %24 = arith.mulf %21, %23 : vector<8x256xf32>
    %25 = arith.addf %17, %24 : vector<8x256xf32>
    %c0_7 = arith.constant 0 : index
    %c0_8 = arith.constant 0 : index
    %c0_9 = arith.constant 0 : index
    %26 = vector.load %arg4[%c0_7, %c0_8, %c0_9] : memref<1x8x8xf32, #tpu.memory_space<vmem>>, vector<1x8x8xf32>
    %27 = vector.shape_cast %26 : vector<1x8x8xf32> to vector<8x8xf32>
    %28 = vector.extract_strided_slice %27 {offsets = [0, 0], sizes = [8, 1], strides = [1, 1]} : vector<8x8xf32> to vector<8x1xf32>
    %29 = vector.extract_strided_slice %25 {offsets = [0, 0], sizes = [1, 256], strides = [1, 1]} : vector<8x256xf32> to vector<1x256xf32>
    %30 = vector.broadcast %28 : vector<8x1xf32> to vector<8x256xf32>
    %31 = vector.broadcast %29 : vector<1x256xf32> to vector<8x256xf32>
    %32 = arith.mulf %30, %31 : vector<8x256xf32>
    %33 = vector.extract_strided_slice %27 {offsets = [0, 1], sizes = [8, 1], strides = [1, 1]} : vector<8x8xf32> to vector<8x1xf32>
    %34 = vector.extract_strided_slice %25 {offsets = [1, 0], sizes = [1, 256], strides = [1, 1]} : vector<8x256xf32> to vector<1x256xf32>
    %35 = vector.broadcast %33 : vector<8x1xf32> to vector<8x256xf32>
    %36 = vector.broadcast %34 : vector<1x256xf32> to vector<8x256xf32>
    %37 = arith.mulf %35, %36 : vector<8x256xf32>
    %38 = arith.addf %32, %37 : vector<8x256xf32>
    %39 = vector.extract_strided_slice %27 {offsets = [0, 2], sizes = [8, 1], strides = [1, 1]} : vector<8x8xf32> to vector<8x1xf32>
    %40 = vector.extract_strided_slice %25 {offsets = [2, 0], sizes = [1, 256], strides = [1, 1]} : vector<8x256xf32> to vector<1x256xf32>
    %41 = vector.broadcast %39 : vector<8x1xf32> to vector<8x256xf32>
    %42 = vector.broadcast %40 : vector<1x256xf32> to vector<8x256xf32>
    %43 = arith.mulf %41, %42 : vector<8x256xf32>
    %44 = arith.addf %38, %43 : vector<8x256xf32>
    %45 = vector.extract_strided_slice %27 {offsets = [0, 3], sizes = [8, 1], strides = [1, 1]} : vector<8x8xf32> to vector<8x1xf32>
    %46 = vector.extract_strided_slice %25 {offsets = [3, 0], sizes = [1, 256], strides = [1, 1]} : vector<8x256xf32> to vector<1x256xf32>
    %47 = vector.broadcast %45 : vector<8x1xf32> to vector<8x256xf32>
    %48 = vector.broadcast %46 : vector<1x256xf32> to vector<8x256xf32>
    %49 = arith.mulf %47, %48 : vector<8x256xf32>
    %50 = arith.addf %44, %49 : vector<8x256xf32>
    %51 = vector.extract_strided_slice %27 {offsets = [0, 4], sizes = [8, 1], strides = [1, 1]} : vector<8x8xf32> to vector<8x1xf32>
    %52 = vector.extract_strided_slice %25 {offsets = [4, 0], sizes = [1, 256], strides = [1, 1]} : vector<8x256xf32> to vector<1x256xf32>
    %53 = vector.broadcast %51 : vector<8x1xf32> to vector<8x256xf32>
    %54 = vector.broadcast %52 : vector<1x256xf32> to vector<8x256xf32>
    %55 = arith.mulf %53, %54 : vector<8x256xf32>
    %56 = arith.addf %50, %55 : vector<8x256xf32>
    %57 = vector.extract_strided_slice %27 {offsets = [0, 5], sizes = [8, 1], strides = [1, 1]} : vector<8x8xf32> to vector<8x1xf32>
    %58 = vector.extract_strided_slice %25 {offsets = [5, 0], sizes = [1, 256], strides = [1, 1]} : vector<8x256xf32> to vector<1x256xf32>
    %59 = vector.broadcast %57 : vector<8x1xf32> to vector<8x256xf32>
    %60 = vector.broadcast %58 : vector<1x256xf32> to vector<8x256xf32>
    %61 = arith.mulf %59, %60 : vector<8x256xf32>
    %62 = arith.addf %56, %61 : vector<8x256xf32>
    %63 = vector.extract_strided_slice %27 {offsets = [0, 6], sizes = [8, 1], strides = [1, 1]} : vector<8x8xf32> to vector<8x1xf32>
    %64 = vector.extract_strided_slice %25 {offsets = [6, 0], sizes = [1, 256], strides = [1, 1]} : vector<8x256xf32> to vector<1x256xf32>
    %65 = vector.broadcast %63 : vector<8x1xf32> to vector<8x256xf32>
    %66 = vector.broadcast %64 : vector<1x256xf32> to vector<8x256xf32>
    %67 = arith.mulf %65, %66 : vector<8x256xf32>
    %68 = arith.addf %62, %67 : vector<8x256xf32>
    %69 = vector.extract_strided_slice %27 {offsets = [0, 7], sizes = [8, 1], strides = [1, 1]} : vector<8x8xf32> to vector<8x1xf32>
    %70 = vector.extract_strided_slice %25 {offsets = [7, 0], sizes = [1, 256], strides = [1, 1]} : vector<8x256xf32> to vector<1x256xf32>
    %71 = vector.broadcast %69 : vector<8x1xf32> to vector<8x256xf32>
    %72 = vector.broadcast %70 : vector<1x256xf32> to vector<8x256xf32>
    %73 = arith.mulf %71, %72 : vector<8x256xf32>
    %74 = arith.addf %68, %73 : vector<8x256xf32>
    %c0_10 = arith.constant 0 : index
    %c0_11 = arith.constant 0 : index
    %c0_12 = arith.constant 0 : index
    %75 = vector.load %arg5[%c0_10, %c0_11, %c0_12] : memref<1x8x1xf32, #tpu.memory_space<vmem>>, vector<1x8x1xf32>
    %76 = vector.shape_cast %75 : vector<1x8x1xf32> to vector<8x1xf32>
    %c0_13 = arith.constant 0 : index
    %c0_14 = arith.constant 0 : index
    %c0_15 = arith.constant 0 : index
    %77 = vector.load %arg6[%c0_13, %c0_14, %c0_15] : memref<1x8x1xf32, #tpu.memory_space<vmem>>, vector<1x8x1xf32>
    %78 = vector.shape_cast %77 : vector<1x8x1xf32> to vector<8x1xf32>
    %cst = arith.constant dense<0.000000e+00> : vector<8xf32>
    %79 = vector.multi_reduction <add>, %74, %cst [1] : vector<8x256xf32> to vector<8xf32>
    %80 = vector.shape_cast %79 : vector<8xf32> to vector<8x1xf32>
    %81 = arith.mulf %74, %74 : vector<8x256xf32>
    %cst_16 = arith.constant dense<0.000000e+00> : vector<8xf32>
    %82 = vector.multi_reduction <add>, %81, %cst_16 [1] : vector<8x256xf32> to vector<8xf32>
    %83 = vector.shape_cast %82 : vector<8xf32> to vector<8x1xf32>
    %cst_17 = arith.constant 3.906250e-03 : f32
    %84 = vector.broadcast %cst_17 : f32 to vector<8x1xf32>
    %85 = arith.mulf %80, %84 : vector<8x1xf32>
    %cst_18 = arith.constant 3.906250e-03 : f32
    %86 = vector.broadcast %cst_18 : f32 to vector<8x1xf32>
    %87 = arith.mulf %83, %86 : vector<8x1xf32>
    %88 = arith.mulf %85, %85 : vector<8x1xf32>
    %89 = arith.subf %87, %88 : vector<8x1xf32>
    %cst_19 = arith.constant 9.99999974E-6 : f32
    %90 = vector.broadcast %cst_19 : f32 to vector<8x1xf32>
    %91 = arith.addf %89, %90 : vector<8x1xf32>
    %92 = math.rsqrt %91 : vector<8x1xf32>
    %93 = arith.mulf %76, %92 : vector<8x1xf32>
    %94 = arith.mulf %85, %93 : vector<8x1xf32>
    %95 = arith.subf %78, %94 : vector<8x1xf32>
    %96 = vector.broadcast %93 : vector<8x1xf32> to vector<8x256xf32>
    %97 = arith.mulf %74, %96 : vector<8x256xf32>
    %98 = vector.broadcast %95 : vector<8x1xf32> to vector<8x256xf32>
    %99 = arith.addf %97, %98 : vector<8x256xf32>
    %c1_i32_20 = arith.constant 1 : i32
    %100 = arith.cmpi ne, %arg0, %c1_i32_20 : i32
    %101 = arith.extui %100 : i1 to i32
    %c0_i32_21 = arith.constant 0 : i32
    %102 = arith.cmpi ne, %101, %c0_i32_21 : i32
    scf.if %102 {
      %cst_24 = arith.constant 0.000000e+00 : f32
      %106 = vector.broadcast %cst_24 : f32 to vector<8x256xf32>
      %107 = arith.maximumf %99, %106 : vector<8x256xf32>
      %c0_25 = arith.constant 0 : index
      %c0_26 = arith.constant 0 : index
      %108 = vector.load %arg11[%c0_25, %c0_26] : memref<8x256xf32, #tpu.memory_space<vmem>>, vector<8x256xf32>
      tpu.vector_store %arg11[%c0_25, %c0_26], %107 {strides = array<i32>} : memref<8x256xf32, #tpu.memory_space<vmem>>, vector<8x256xf32>,
    } else {
    }
    %c1_i32_22 = arith.constant 1 : i32
    %103 = arith.cmpi eq, %arg0, %c1_i32_22 : i32
    %104 = arith.extui %103 : i1 to i32
    %c0_i32_23 = arith.constant 0 : i32
    %105 = arith.cmpi ne, %104, %c0_i32_23 : i32
    scf.if %105 {
      %c0_24 = arith.constant 0 : index
      %c0_25 = arith.constant 0 : index
      %106 = vector.load %arg7[%c0_24, %c0_25] : memref<8x8xf32, #tpu.memory_space<vmem>>, vector<8x8xf32>
      %c0_26 = arith.constant 0 : index
      %c0_27 = arith.constant 0 : index
      %107 = vector.load %arg2[%c0_26, %c0_27] : memref<8x256xf32, #tpu.memory_space<vmem>>, vector<8x256xf32>
      %108 = vector.extract_strided_slice %106 {offsets = [0, 0], sizes = [8, 1], strides = [1, 1]} : vector<8x8xf32> to vector<8x1xf32>
      %109 = vector.extract_strided_slice %107 {offsets = [0, 0], sizes = [1, 256], strides = [1, 1]} : vector<8x256xf32> to vector<1x256xf32>
      %110 = vector.broadcast %108 : vector<8x1xf32> to vector<8x256xf32>
      %111 = vector.broadcast %109 : vector<1x256xf32> to vector<8x256xf32>
      %112 = arith.mulf %110, %111 : vector<8x256xf32>
      %113 = vector.extract_strided_slice %106 {offsets = [0, 1], sizes = [8, 1], strides = [1, 1]} : vector<8x8xf32> to vector<8x1xf32>
      %114 = vector.extract_strided_slice %107 {offsets = [1, 0], sizes = [1, 256], strides = [1, 1]} : vector<8x256xf32> to vector<1x256xf32>
      %115 = vector.broadcast %113 : vector<8x1xf32> to vector<8x256xf32>
      %116 = vector.broadcast %114 : vector<1x256xf32> to vector<8x256xf32>
      %117 = arith.mulf %115, %116 : vector<8x256xf32>
      %118 = arith.addf %112, %117 : vector<8x256xf32>
      %119 = vector.extract_strided_slice %106 {offsets = [0, 2], sizes = [8, 1], strides = [1, 1]} : vector<8x8xf32> to vector<8x1xf32>
      %120 = vector.extract_strided_slice %107 {offsets = [2, 0], sizes = [1, 256], strides = [1, 1]} : vector<8x256xf32> to vector<1x256xf32>
      %121 = vector.broadcast %119 : vector<8x1xf32> to vector<8x256xf32>
      %122 = vector.broadcast %120 : vector<1x256xf32> to vector<8x256xf32>
      %123 = arith.mulf %121, %122 : vector<8x256xf32>
      %124 = arith.addf %118, %123 : vector<8x256xf32>
      %125 = vector.extract_strided_slice %106 {offsets = [0, 3], sizes = [8, 1], strides = [1, 1]} : vector<8x8xf32> to vector<8x1xf32>
      %126 = vector.extract_strided_slice %107 {offsets = [3, 0], sizes = [1, 256], strides = [1, 1]} : vector<8x256xf32> to vector<1x256xf32>
      %127 = vector.broadcast %125 : vector<8x1xf32> to vector<8x256xf32>
      %128 = vector.broadcast %126 : vector<1x256xf32> to vector<8x256xf32>
      %129 = arith.mulf %127, %128 : vector<8x256xf32>
      %130 = arith.addf %124, %129 : vector<8x256xf32>
      %131 = vector.extract_strided_slice %106 {offsets = [0, 4], sizes = [8, 1], strides = [1, 1]} : vector<8x8xf32> to vector<8x1xf32>
      %132 = vector.extract_strided_slice %107 {offsets = [4, 0], sizes = [1, 256], strides = [1, 1]} : vector<8x256xf32> to vector<1x256xf32>
      %133 = vector.broadcast %131 : vector<8x1xf32> to vector<8x256xf32>
      %134 = vector.broadcast %132 : vector<1x256xf32> to vector<8x256xf32>
      %135 = arith.mulf %133, %134 : vector<8x256xf32>
      %136 = arith.addf %130, %135 : vector<8x256xf32>
      %137 = vector.extract_strided_slice %106 {offsets = [0, 5], sizes = [8, 1], strides = [1, 1]} : vector<8x8xf32> to vector<8x1xf32>
      %138 = vector.extract_strided_slice %107 {offsets = [5, 0], sizes = [1, 256], strides = [1, 1]} : vector<8x256xf32> to vector<1x256xf32>
      %139 = vector.broadcast %137 : vector<8x1xf32> to vector<8x256xf32>
      %140 = vector.broadcast %138 : vector<1x256xf32> to vector<8x256xf32>
      %141 = arith.mulf %139, %140 : vector<8x256xf32>
      %142 = arith.addf %136, %141 : vector<8x256xf32>
      %143 = vector.extract_strided_slice %106 {offsets = [0, 6], sizes = [8, 1], strides = [1, 1]} : vector<8x8xf32> to vector<8x1xf32>
      %144 = vector.extract_strided_slice %107 {offsets = [6, 0], sizes = [1, 256], strides = [1, 1]} : vector<8x256xf32> to vector<1x256xf32>
      %145 = vector.broadcast %143 : vector<8x1xf32> to vector<8x256xf32>
      %146 = vector.broadcast %144 : vector<1x256xf32> to vector<8x256xf32>
      %147 = arith.mulf %145, %146 : vector<8x256xf32>
      %148 = arith.addf %142, %147 : vector<8x256xf32>
      %149 = vector.extract_strided_slice %106 {offsets = [0, 7], sizes = [8, 1], strides = [1, 1]} : vector<8x8xf32> to vector<8x1xf32>
      %150 = vector.extract_strided_slice %107 {offsets = [7, 0], sizes = [1, 256], strides = [1, 1]} : vector<8x256xf32> to vector<1x256xf32>
      %151 = vector.broadcast %149 : vector<8x1xf32> to vector<8x256xf32>
      %152 = vector.broadcast %150 : vector<1x256xf32> to vector<8x256xf32>
      %153 = arith.mulf %151, %152 : vector<8x256xf32>
      %154 = arith.addf %148, %153 : vector<8x256xf32>
      %c0_28 = arith.constant 0 : index
      %c0_29 = arith.constant 0 : index
      %155 = vector.load %arg8[%c0_28, %c0_29] : memref<8x1xf32, #tpu.memory_space<vmem>>, vector<8x1xf32>
      %c0_30 = arith.constant 0 : index
      %c0_31 = arith.constant 0 : index
      %156 = vector.load %arg9[%c0_30, %c0_31] : memref<8x1xf32, #tpu.memory_space<vmem>>, vector<8x1xf32>
      %cst_32 = arith.constant dense<0.000000e+00> : vector<8xf32>
      %157 = vector.multi_reduction <add>, %154, %cst_32 [1] : vector<8x256xf32> to vector<8xf32>
      %158 = vector.shape_cast %157 : vector<8xf32> to vector<8x1xf32>
      %159 = arith.mulf %154, %154 : vector<8x256xf32>
      %cst_33 = arith.constant dense<0.000000e+00> : vector<8xf32>
      %160 = vector.multi_reduction <add>, %159, %cst_33 [1] : vector<8x256xf32> to vector<8xf32>
      %161 = vector.shape_cast %160 : vector<8xf32> to vector<8x1xf32>
      %cst_34 = arith.constant 3.906250e-03 : f32
      %162 = vector.broadcast %cst_34 : f32 to vector<8x1xf32>
      %163 = arith.mulf %158, %162 : vector<8x1xf32>
      %cst_35 = arith.constant 3.906250e-03 : f32
      %164 = vector.broadcast %cst_35 : f32 to vector<8x1xf32>
      %165 = arith.mulf %161, %164 : vector<8x1xf32>
      %166 = arith.mulf %163, %163 : vector<8x1xf32>
      %167 = arith.subf %165, %166 : vector<8x1xf32>
      %cst_36 = arith.constant 9.99999974E-6 : f32
      %168 = vector.broadcast %cst_36 : f32 to vector<8x1xf32>
      %169 = arith.addf %167, %168 : vector<8x1xf32>
      %170 = math.rsqrt %169 : vector<8x1xf32>
      %171 = arith.mulf %155, %170 : vector<8x1xf32>
      %172 = arith.mulf %163, %171 : vector<8x1xf32>
      %173 = arith.subf %156, %172 : vector<8x1xf32>
      %174 = vector.broadcast %171 : vector<8x1xf32> to vector<8x256xf32>
      %175 = arith.mulf %154, %174 : vector<8x256xf32>
      %176 = vector.broadcast %173 : vector<8x1xf32> to vector<8x256xf32>
      %177 = arith.addf %175, %176 : vector<8x256xf32>
      %178 = arith.addf %99, %177 : vector<8x256xf32>
      %cst_37 = arith.constant 0.000000e+00 : f32
      %179 = vector.broadcast %cst_37 : f32 to vector<8x256xf32>
      %180 = arith.maximumf %178, %179 : vector<8x256xf32>
      %c0_38 = arith.constant 0 : index
      %c0_39 = arith.constant 0 : index
      %181 = vector.load %arg10[%c0_38, %c0_39] : memref<8x256xf32, #tpu.memory_space<vmem>>, vector<8x256xf32>
      tpu.vector_store %arg10[%c0_38, %c0_39], %180 {strides = array<i32>} : memref<8x256xf32, #tpu.memory_space<vmem>>, vector<8x256xf32>,
    } else {
    }
    return
  }
  func.func @transform_0(%arg0: i32) -> (i32, i32) {
    %c0_i32 = arith.constant 0 : i32
    %c0_i32_0 = arith.constant 0 : i32
    %c0_i32_1 = arith.constant 0 : i32
    return %c0_i32, %c0_i32_0 : i32, i32
  }
  func.func @transform_1(%arg0: i32) -> (i32, i32) {
    %c0_i32 = arith.constant 0 : i32
    %c0_i32_0 = arith.constant 0 : i32
    %c0_i32_1 = arith.constant 0 : i32
    return %c0_i32, %c0_i32_0 : i32, i32
  }
  func.func @transform_2(%arg0: i32) -> (i32, i32, i32) {
    %c0_i32 = arith.constant 0 : i32
    %c0_i32_0 = arith.constant 0 : i32
    %c0_i32_1 = arith.constant 0 : i32
    return %arg0, %c0_i32, %c0_i32_0 : i32, i32, i32
  }
  func.func @transform_3(%arg0: i32) -> (i32, i32, i32) {
    %c0_i32 = arith.constant 0 : i32
    %c0_i32_0 = arith.constant 0 : i32
    %c0_i32_1 = arith.constant 0 : i32
    return %arg0, %c0_i32, %c0_i32_0 : i32, i32, i32
  }
  func.func @transform_4(%arg0: i32) -> (i32, i32, i32) {
    %c0_i32 = arith.constant 0 : i32
    %c0_i32_0 = arith.constant 0 : i32
    %c0_i32_1 = arith.constant 0 : i32
    return %arg0, %c0_i32, %c0_i32_0 : i32, i32, i32
  }
  func.func @transform_5(%arg0: i32) -> (i32, i32, i32) {
    %c0_i32 = arith.constant 0 : i32
    %c0_i32_0 = arith.constant 0 : i32
    %c0_i32_1 = arith.constant 0 : i32
    return %arg0, %c0_i32, %c0_i32_0 : i32, i32, i32
  }
  func.func @transform_6(%arg0: i32) -> (i32, i32) {
    %c0_i32 = arith.constant 0 : i32
    %c0_i32_0 = arith.constant 0 : i32
    %c0_i32_1 = arith.constant 0 : i32
    return %c0_i32, %c0_i32_0 : i32, i32
  }
  func.func @transform_7(%arg0: i32) -> (i32, i32) {
    %c0_i32 = arith.constant 0 : i32
    %c0_i32_0 = arith.constant 0 : i32
    %c0_i32_1 = arith.constant 0 : i32
    return %c0_i32, %c0_i32_0 : i32, i32
  }
  func.func @transform_8(%arg0: i32) -> (i32, i32) {
    %c0_i32 = arith.constant 0 : i32
    %c0_i32_0 = arith.constant 0 : i32
    %c0_i32_1 = arith.constant 0 : i32
    return %c0_i32, %c0_i32_0 : i32, i32
  }
  func.func @transform_9(%arg0: i32) -> (i32, i32) {
    %c0_i32 = arith.constant 0 : i32
    %c0_i32_0 = arith.constant 0 : i32
    %c0_i32_1 = arith.constant 0 : i32
    return %c0_i32, %c0_i32_0 : i32, i32
  }
}

</mosaic_0001>

<llo_original>
// kernel: tpu_custom_call.1
$region0: #{tpu_custom_call.1}
  #allocation0 [shape = 'u32[]', space=smem, size = 0x4, offset = 0x4, fixed_abs, tag = 'smem constant byte address 0x4 - core index']
  #allocation1 [shape = 'u32[144,128]{1,0:T(1,128)}', space=vmem, size = 0x12000, scoped, tag = 'internal scratch']
  #allocation2 [shape = 'f32[8,256]{1,0:T(8,128)}', space=vmem, size = 0x2000, scoped, tag = 'scratch operand']
  %s0 = inlined_call_operand.vmem [shape: f32[3,256], index: 0, kind: input, shape index: {}]
  %s1 = inlined_call_operand.vmem [shape: f32[8,256], index: 1, kind: input, shape index: {}]
  %s2 = inlined_call_operand.vmem [shape: f32[2,8,3], index: 2, kind: input, shape index: {}]
  %s3 = inlined_call_operand.vmem [shape: f32[2,8,8], index: 3, kind: input, shape index: {}]
  %s4 = inlined_call_operand.vmem [shape: f32[2,8,1], index: 4, kind: input, shape index: {}]
  %s5 = inlined_call_operand.vmem [shape: f32[2,8,1], index: 5, kind: input, shape index: {}]
  %s6 = inlined_call_operand.vmem [shape: f32[8,8], index: 6, kind: input, shape index: {}]
  %s7 = inlined_call_operand.vmem [shape: f32[8,1], index: 7, kind: input, shape index: {}]
  %s8 = inlined_call_operand.vmem [shape: f32[8,1], index: 8, kind: input, shape index: {}]
  %s9 = inlined_call_operand.hbm [shape: f32[8,256], index: 9, kind: output, shape index: {}]
  %s10 = sld [smem:[#allocation0]]
  $region81: #{tpu_custom_call.1} parent=0
    _
  %s12 = ssub.s32 1, %s10
  %s13 = scalar_select 0, %s12, %s10
  $region1: #{tpu_custom_call.1} parent=0
    #allocation3 [shape = 'u8[8192]{0}', space=vmem, size = 0x2000, scoped, tag = 'output window, operand 0, single buffered']
    #allocation4 [shape = 's32[2]{0}', space=sflag, size = 0x8, scoped, tag = 'scoped memory for tpu_custom_call.1']
    %14 = vsyncpa [#allocation4], 0
    loop: start=0, step=1, limit=4
    $region2: #{tpu_custom_call.1} parent=1 // loop_pre_header
      _
    $region3: #{tpu_custom_call.1} parent=1 // loop_header
      %s16 = sphi 0, %s20
      %p17 = scmp.ge.s32.totalorder %s16, 4
      %s24 = sphi 0, %s24
      %s26 = sphi 0, %s24
      %s27 = sphi 0, %s26
      %s41 = sphi 0, %s27
      %s45 = sphi 0, %s45
      %s47 = sphi 0, %s45
      %s48 = sphi 0, %s47
      %s62 = sphi 0, %s48
      %s68 = sphi 0, %s70
      %s71 = sphi 0, %s68
      %s72 = sphi 0, %s71
      %s88 = sphi 0, %s72
      %s94 = sphi 0, %s96
      %s97 = sphi 0, %s94
      %s98 = sphi 0, %s97
      %s114 = sphi 0, %s98
      %s120 = sphi 0, %s122
      %s123 = sphi 0, %s120
      %s124 = sphi 0, %s123
      %s140 = sphi 0, %s124
      %s146 = sphi 0, %s148
      %s149 = sphi 0, %s146
      %s150 = sphi 0, %s149
      %s166 = sphi 0, %s150
      %s170 = sphi 0, %s170
      %s172 = sphi 0, %s170
      %s173 = sphi 0, %s172
      %s187 = sphi 0, %s173
      %s191 = sphi 0, %s191
      %s193 = sphi 0, %s191
      %s194 = sphi 0, %s193
      %s208 = sphi 0, %s194
      %s212 = sphi 0, %s212
      %s214 = sphi 0, %s212
      %s215 = sphi 0, %s214
      %s229 = sphi 0, %s215
      %s233 = sphi 0, %s233
      %s235 = sphi 0, %s233
      %s236 = sphi 0, %s235
      %s250 = sphi 0, %s236
    $region4: #{tpu_custom_call.1} parent=1 // loop_header_branch
      %19 = sbr.rel (%p17) target = $region8
    $region5: #{tpu_custom_call.1} parent=1 // loop_body
      %s21 = ssub.s32 %s16, 1
      %s22 = ssub.s32 %s16, 2
      %s23 = sadd.s32 %s16, 1
      %s25 = sadd.s32 %s24, 1
      %p28 = scmp.eq.s32.totalorder %s16, 1
      %p29 = scmp.ne.s32.totalorder %s24, %s26
      %p30 = scmp.eq.s32.totalorder %s16, 0
      %p31 = por %p29, %p30
      %p32 = scmp.ne.s32.totalorder %s24, %s26
      %p33 = scmp.eq.s32.totalorder %s21, 1
      %p34 = por %p32, %p33
      %p35 = scmp.ne.s32.totalorder %s26, %s27
      %p36 = scmp.eq.s32.totalorder %s21, 0
      %p37 = por %p35, %p36
      %p38 = scmp.ne.s32.totalorder %s26, %s27
      %p39 = scmp.eq.s32.totalorder %s22, 1
      %p40 = por %p38, %p39
      %p42 = scmp.ne.s32.totalorder %s27, %s41
      %p43 = scmp.eq.s32.totalorder %s22, 0
      %p44 = por %p42, %p43
      %s46 = sadd.s32 %s45, 1
      %p49 = scmp.eq.s32.totalorder %s16, 1
      %p50 = scmp.ne.s32.totalorder %s45, %s47
      %p51 = scmp.eq.s32.totalorder %s16, 0
      %p52 = por %p50, %p51
      %p53 = scmp.ne.s32.totalorder %s45, %s47
      %p54 = scmp.eq.s32.totalorder %s21, 1
      %p55 = por %p53, %p54
      %p56 = scmp.ne.s32.totalorder %s47, %s48
      %p57 = scmp.eq.s32.totalorder %s21, 0
      %p58 = por %p56, %p57
      %p59 = scmp.ne.s32.totalorder %s47, %s48
      %p60 = scmp.eq.s32.totalorder %s22, 1
      %p61 = por %p59, %p60
      %p63 = scmp.ne.s32.totalorder %s48, %s62
      %p64 = scmp.eq.s32.totalorder %s22, 0
      %p65 = por %p63, %p64
      %s66 = ssub.s32 %s16, %s23
      %p67 = scmp.eq.s32.totalorder %s66, 0
      %s69 = sadd.s32 %s68, 1
      %s70 = scalar_select %p67, %s68, %s69
      %p73 = pneg %p67
      %p74 = scmp.eq.s32.totalorder %s16, 1
      %p75 = por %p73, %p74
      %p76 = scmp.ne.s32.totalorder %s68, %s71
      %p77 = scmp.eq.s32.totalorder %s16, 0
      %p78 = por %p76, %p77
      %p79 = scmp.ne.s32.totalorder %s68, %s71
      %p80 = scmp.eq.s32.totalorder %s21, 1
      %p81 = por %p79, %p80
      %p82 = scmp.ne.s32.totalorder %s71, %s72
      %p83 = scmp.eq.s32.totalorder %s21, 0
      %p84 = por %p82, %p83
      %p85 = scmp.ne.s32.totalorder %s71, %s72
      %p86 = scmp.eq.s32.totalorder %s22, 1
      %p87 = por %p85, %p86
      %p89 = scmp.ne.s32.totalorder %s72, %s88
      %p90 = scmp.eq.s32.totalorder %s22, 0
      %p91 = por %p89, %p90
      %s92 = ssub.s32 %s16, %s23
      %p93 = scmp.eq.s32.totalorder %s92, 0
      %s95 = sadd.s32 %s94, 1
      %s96 = scalar_select %p93, %s94, %s95
      %p99 = pneg %p93
      %p100 = scmp.eq.s32.totalorder %s16, 1
      %p101 = por %p99, %p100
      %p102 = scmp.ne.s32.totalorder %s94, %s97
      %p103 = scmp.eq.s32.totalorder %s16, 0
      %p104 = por %p102, %p103
      %p105 = scmp.ne.s32.totalorder %s94, %s97
      %p106 = scmp.eq.s32.totalorder %s21, 1
      %p107 = por %p105, %p106
      %p108 = scmp.ne.s32.totalorder %s97, %s98
      %p109 = scmp.eq.s32.totalorder %s21, 0
      %p110 = por %p108, %p109
      %p111 = scmp.ne.s32.totalorder %s97, %s98
      %p112 = scmp.eq.s32.totalorder %s22, 1
      %p113 = por %p111, %p112
      %p115 = scmp.ne.s32.totalorder %s98, %s114
      %p116 = scmp.eq.s32.totalorder %s22, 0
      %p117 = por %p115, %p116
      %s118 = ssub.s32 %s16, %s23
      %p119 = scmp.eq.s32.totalorder %s118, 0
      %s121 = sadd.s32 %s120, 1
      %s122 = scalar_select %p119, %s120, %s121
      %p125 = pneg %p119
      %p126 = scmp.eq.s32.totalorder %s16, 1
      %p127 = por %p125, %p126
      %p128 = scmp.ne.s32.totalorder %s120, %s123
      %p129 = scmp.eq.s32.totalorder %s16, 0
      %p130 = por %p128, %p129
      %p131 = scmp.ne.s32.totalorder %s120, %s123
      %p132 = scmp.eq.s32.totalorder %s21, 1
      %p133 = por %p131, %p132
      %p134 = scmp.ne.s32.totalorder %s123, %s124
      %p135 = scmp.eq.s32.totalorder %s21, 0
      %p136 = por %p134, %p135
      %p137 = scmp.ne.s32.totalorder %s123, %s124
      %p138 = scmp.eq.s32.totalorder %s22, 1
      %p139 = por %p137, %p138
      %p141 = scmp.ne.s32.totalorder %s124, %s140
      %p142 = scmp.eq.s32.totalorder %s22, 0
      %p143 = por %p141, %p142
      %s144 = ssub.s32 %s16, %s23
      %p145 = scmp.eq.s32.totalorder %s144, 0
      %s147 = sadd.s32 %s146, 1
      %s148 = scalar_select %p145, %s146, %s147
      %p151 = pneg %p145
      %p152 = scmp.eq.s32.totalorder %s16, 1
      %p153 = por %p151, %p152
      %p154 = scmp.ne.s32.totalorder %s146, %s149
      %p155 = scmp.eq.s32.totalorder %s16, 0
      %p156 = por %p154, %p155
      %p157 = scmp.ne.s32.totalorder %s146, %s149
      %p158 = scmp.eq.s32.totalorder %s21, 1
      %p159 = por %p157, %p158
      %p160 = scmp.ne.s32.totalorder %s149, %s150
      %p161 = scmp.eq.s32.totalorder %s21, 0
      %p162 = por %p160, %p161
      %p163 = scmp.ne.s32.totalorder %s149, %s150
      %p164 = scmp.eq.s32.totalorder %s22, 1
      %p165 = por %p163, %p164
      %p167 = scmp.ne.s32.totalorder %s150, %s166
      %p168 = scmp.eq.s32.totalorder %s22, 0
      %p169 = por %p167, %p168
      %s171 = sadd.s32 %s170, 1
      %p174 = scmp.eq.s32.totalorder %s16, 1
      %p175 = scmp.ne.s32.totalorder %s170, %s172
      %p176 = scmp.eq.s32.totalorder %s16, 0
      %p177 = por %p175, %p176
      %p178 = scmp.ne.s32.totalorder %s170, %s172
      %p179 = scmp.eq.s32.totalorder %s21, 1
      %p180 = por %p178, %p179
      %p181 = scmp.ne.s32.totalorder %s172, %s173
      %p182 = scmp.eq.s32.totalorder %s21, 0
      %p183 = por %p181, %p182
      %p184 = scmp.ne.s32.totalorder %s172, %s173
      %p185 = scmp.eq.s32.totalorder %s22, 1
      %p186 = por %p184, %p185
      %p188 = scmp.ne.s32.totalorder %s173, %s187
      %p189 = scmp.eq.s32.totalorder %s22, 0
      %p190 = por %p188, %p189
      %s192 = sadd.s32 %s191, 1
      %p195 = scmp.eq.s32.totalorder %s16, 1
      %p196 = scmp.ne.s32.totalorder %s191, %s193
      %p197 = scmp.eq.s32.totalorder %s16, 0
      %p198 = por %p196, %p197
      %p199 = scmp.ne.s32.totalorder %s191, %s193
      %p200 = scmp.eq.s32.totalorder %s21, 1
      %p201 = por %p199, %p200
      %p202 = scmp.ne.s32.totalorder %s193, %s194
      %p203 = scmp.eq.s32.totalorder %s21, 0
      %p204 = por %p202, %p203
      %p205 = scmp.ne.s32.totalorder %s193, %s194
      %p206 = scmp.eq.s32.totalorder %s22, 1
      %p207 = por %p205, %p206
      %p209 = scmp.ne.s32.totalorder %s194, %s208
      %p210 = scmp.eq.s32.totalorder %s22, 0
      %p211 = por %p209, %p210
      %s213 = sadd.s32 %s212, 1
      %p216 = scmp.eq.s32.totalorder %s16, 1
      %p217 = scmp.ne.s32.totalorder %s212, %s214
      %p218 = scmp.eq.s32.totalorder %s16, 0
      %p219 = por %p217, %p218
      %p220 = scmp.ne.s32.totalorder %s212, %s214
      %p221 = scmp.eq.s32.totalorder %s21, 1
      %p222 = por %p220, %p221
      %p223 = scmp.ne.s32.totalorder %s214, %s215
      %p224 = scmp.eq.s32.totalorder %s21, 0
      %p225 = por %p223, %p224
      %p226 = scmp.ne.s32.totalorder %s214, %s215
      %p227 = scmp.eq.s32.totalorder %s22, 1
      %p228 = por %p226, %p227
      %p230 = scmp.ne.s32.totalorder %s215, %s229
      %p231 = scmp.eq.s32.totalorder %s22, 0
      %p232 = por %p230, %p231
      %s234 = sadd.s32 %s233, 1
      %p237 = scmp.eq.s32.totalorder %s16, 1
      %p238 = scmp.ne.s32.totalorder %s233, %s235
      %p239 = scmp.eq.s32.totalorder %s16, 0
      %p240 = por %p238, %p239
      %p241 = scmp.ne.s32.totalorder %s233, %s235
      %p242 = scmp.eq.s32.totalorder %s21, 1
      %p243 = por %p241, %p242
      %p244 = scmp.ne.s32.totalorder %s235, %s236
      %p245 = scmp.eq.s32.totalorder %s21, 0
      %p246 = por %p244, %p245
      %p247 = scmp.ne.s32.totalorder %s235, %s236
      %p248 = scmp.eq.s32.totalorder %s22, 1
      %p249 = por %p247, %p248
      %p251 = scmp.ne.s32.totalorder %s236, %s250
      %p252 = scmp.eq.s32.totalorder %s22, 0
      %p253 = por %p251, %p252
      %p254 = scmp.le.s32.totalorder 1, %s16
      %p255 = scmp.lt.s32.totalorder %s16, 3
      %p256 = pnand %p254, %p255
      %p257 = pneg %p256
      // Predicated region
      $region9: #{tpu_custom_call.1} parent=5 // pred_check
        _
      $region10: #{tpu_custom_call.1} parent=5 // pred_check_branch
        %259 = sbr.rel (%p256) target = $region12
      $region11: #{tpu_custom_call.1} parent=5 // pred_region
        %s260 = ssub.s32 %s16, 1
        // Predicated region
        $region13: #{tpu_custom_call.1} parent=11 // pred_check
          %p261 = pneg %p37
        $region14: #{tpu_custom_call.1} parent=11 // pred_check_branch
          %263 = sbr.rel (%p261) target = $region16
        $region15: #{tpu_custom_call.1} parent=11 // pred_region
          _
        $region16: #{tpu_custom_call.1} parent=11 // pred_fallthru
          _
        // Predicated region
        $region17: #{tpu_custom_call.1} parent=11 // pred_check
          %p264 = pneg %p58
        $region18: #{tpu_custom_call.1} parent=11 // pred_check_branch
          %266 = sbr.rel (%p264) target = $region20
        $region19: #{tpu_custom_call.1} parent=11 // pred_region
          _
        $region20: #{tpu_custom_call.1} parent=11 // pred_fallthru
          _
        // Predicated region
        $region21: #{tpu_custom_call.1} parent=11 // pred_check
          %p267 = pneg %p183
        $region22: #{tpu_custom_call.1} parent=11 // pred_check_branch
          %269 = sbr.rel (%p267) target = $region24
        $region23: #{tpu_custom_call.1} parent=11 // pred_region
          _
        $region24: #{tpu_custom_call.1} parent=11 // pred_fallthru
          _
        // Predicated region
        $region25: #{tpu_custom_call.1} parent=11 // pred_check
          %p270 = pneg %p204
        $region26: #{tpu_custom_call.1} parent=11 // pred_check_branch
          %272 = sbr.rel (%p270) target = $region28
        $region27: #{tpu_custom_call.1} parent=11 // pred_region
          _
        $region28: #{tpu_custom_call.1} parent=11 // pred_fallthru
          _
        // Predicated region
        $region29: #{tpu_custom_call.1} parent=11 // pred_check
          %p273 = pneg %p225
        $region30: #{tpu_custom_call.1} parent=11 // pred_check_branch
          %275 = sbr.rel (%p273) target = $region32
        $region31: #{tpu_custom_call.1} parent=11 // pred_region
          _
        $region32: #{tpu_custom_call.1} parent=11 // pred_fallthru
          _
      $region12: #{tpu_custom_call.1} parent=5 // pred_fallthru
        _
      %p276 = scmp.lt.s32.totalorder %s16, 2
      // Predicated region
      $region33: #{tpu_custom_call.1} parent=5 // pred_check
        %p277 = pneg %p276
      $region34: #{tpu_custom_call.1} parent=5 // pred_check_branch
        %279 = sbr.rel (%p277) target = $region36
      $region35: #{tpu_custom_call.1} parent=5 // pred_region
        // Predicated region
        $region37: #{tpu_custom_call.1} parent=35 // pred_check
          %p280 = pneg %p78
        $region38: #{tpu_custom_call.1} parent=35 // pred_check_branch
          %282 = sbr.rel (%p280) target = $region40
        $region39: #{tpu_custom_call.1} parent=35 // pred_region
          %p283 = scmp.lt.s32.totalorder %s16, 1
          %s284 = scalar_select %p283, %s16, 1
          %s285 = smul.addr %s284, 8
          %s286 = scalar_lea.vmem %s2, %s285
        $region40: #{tpu_custom_call.1} parent=35 // pred_fallthru
          _
        // Predicated region
        $region41: #{tpu_custom_call.1} parent=35 // pred_check
          %p287 = pneg %p104
        $region42: #{tpu_custom_call.1} parent=35 // pred_check_branch
          %289 = sbr.rel (%p287) target = $region44
        $region43: #{tpu_custom_call.1} parent=35 // pred_region
          %p290 = scmp.lt.s32.totalorder %s16, 1
          %s291 = scalar_select %p290, %s16, 1
          %s292 = smul.addr %s291, 8
          %s293 = scalar_lea.vmem %s3, %s292
        $region44: #{tpu_custom_call.1} parent=35 // pred_fallthru
          _
        // Predicated region
        $region45: #{tpu_custom_call.1} parent=35 // pred_check
          %p294 = pneg %p130
        $region46: #{tpu_custom_call.1} parent=35 // pred_check_branch
          %296 = sbr.rel (%p294) target = $region48
        $region47: #{tpu_custom_call.1} parent=35 // pred_region
          %p297 = scmp.lt.s32.totalorder %s16, 1
          %s298 = scalar_select %p297, %s16, 1
          %s299 = smul.addr %s298, 8
          %s300 = scalar_lea.vmem %s4, %s299
        $region48: #{tpu_custom_call.1} parent=35 // pred_fallthru
          _
        // Predicated region
        $region49: #{tpu_custom_call.1} parent=35 // pred_check
          %p301 = pneg %p156
        $region50: #{tpu_custom_call.1} parent=35 // pred_check_branch
          %303 = sbr.rel (%p301) target = $region52
        $region51: #{tpu_custom_call.1} parent=35 // pred_region
          %p304 = scmp.lt.s32.totalorder %s16, 1
          %s305 = scalar_select %p304, %s16, 1
          %s306 = smul.addr %s305, 8
          %s307 = scalar_lea.vmem %s5, %s306
        $region52: #{tpu_custom_call.1} parent=35 // pred_fallthru
          _
      $region36: #{tpu_custom_call.1} parent=5 // pred_fallthru
        _
      %p308 = scmp.le.s32.totalorder 1, %s16
      %p309 = scmp.lt.s32.totalorder %s16, 3
      %p310 = pnand %p308, %p309
      %p311 = pneg %p310
      // Predicated region
      $region53: #{tpu_custom_call.1} parent=5 // pred_check
        _
      $region54: #{tpu_custom_call.1} parent=5 // pred_check_branch
        %313 = sbr.rel (%p310) target = $region56
      $region55: #{tpu_custom_call.1} parent=5 // pred_region
        %s314 = ssub.s32 %s16, 1
        %p315 = pneg %p37
        %p316 = pneg %p34
        %p317 = pneg %p58
        %p318 = pneg %p55
        %p319 = scmp.lt.s32.totalorder %s21, 1
        %s320 = scalar_select %p319, %s21, 1
        %s321 = smul.addr %s320, 8
        %s322 = scalar_lea.vmem %s2, %s321
        %p323 = pneg %p84
        %p324 = pneg %p81
        %p325 = scmp.lt.s32.totalorder %s21, 1
        %s326 = scalar_select %p325, %s21, 1
        %s327 = smul.addr %s326, 8
        %s328 = scalar_lea.vmem %s3, %s327
        %p329 = pneg %p110
        %p330 = pneg %p107
        %p331 = scmp.lt.s32.totalorder %s21, 1
        %s332 = scalar_select %p331, %s21, 1
        %s333 = smul.addr %s332, 8
        %s334 = scalar_lea.vmem %s4, %s333
        %p335 = pneg %p136
        %p336 = pneg %p133
        %p337 = scmp.lt.s32.totalorder %s21, 1
        %s338 = scalar_select %p337, %s21, 1
        %s339 = smul.addr %s338, 8
        %s340 = scalar_lea.vmem %s5, %s339
        %p341 = pneg %p162
        %p342 = pneg %p159
        %p343 = pneg %p183
        %p344 = pneg %p180
        %p345 = pneg %p204
        %p346 = pneg %p201
        %p347 = pneg %p225
        %p348 = pneg %p222
        %p349 = pneg %p246
        %p350 = pneg %p243
        %p351 = scmp.lt.s32.totalorder %s21, 1
        %s352 = scalar_select %p351, %s21, 1
        %s353 = smul.addr %s352, 8
        %s354 = scalar_lea.vmem %s2, %s353
        %p355 = scmp.lt.s32.totalorder %s21, 1
        %s356 = scalar_select %p355, %s21, 1
        %s357 = smul.addr %s356, 8
        %s358 = scalar_lea.vmem %s3, %s357
        %p359 = scmp.lt.s32.totalorder %s21, 1
        %s360 = scalar_select %p359, %s21, 1
        %s361 = smul.addr %s360, 8
        %s362 = scalar_lea.vmem %s4, %s361
        %p363 = scmp.lt.s32.totalorder %s21, 1
        %s364 = scalar_select %p363, %s21, 1
        %s365 = smul.addr %s364, 8
        %s366 = scalar_lea.vmem %s5, %s365
        %p367 = scmp.eq.s32.totalorder %s21, 0
        // Predicated region
        $region57: #{tpu_custom_call.1} parent=55 // pred_check
          %p368 = pneg %p367
        $region58: #{tpu_custom_call.1} parent=55 // pred_check_branch
          %370 = sbr.rel (%p368) target = $region60
        $region59: #{tpu_custom_call.1} parent=55 // pred_region
          %v371 = vld [vmem:[%s1] sm:$0xff]
          %v372 = vld [vmem:[%s1 + $0x8] sm:$0xff]
          %373 = vst [vmem:[#allocation2] sm:$0xff] %v371
          %374 = vst [vmem:[#allocation2 + $0x8] sm:$0xff] %v372
        $region60: #{tpu_custom_call.1} parent=55 // pred_fallthru
          _
        %v375 = vld [vmem:[#allocation2] sm:$0xff]
        %v376 = vld [vmem:[#allocation2 + $0x8] sm:$0xff]
        %v377 = vld [vmem:[%s354] sm:$0xff]
        %v378 = vld [vmem:[%s0] sm:$0x77]
        %380 = vset.pattern.permute.xlu0 1
        %381 = vperm.xlu0 %380, %v377
        %v382 = vpop.permute.xlu0 %381
        %v384 = vmul.f32 %v375, %v382
        %v385 = vmul.f32 %v376, %v382
        %386 = vrot.lane.b32.xlu0 %v375, 1
        %v387 = vpop.permute.xlu0 %386
        %388 = vrot.lane.b32.xlu0 %v376, 1
        %v389 = vpop.permute.xlu0 %388
        %v390 = vlaneseq
        %v391 = vand.u32 %v390, 127
        %vm392 = vcmp.lt.s32.totalorder %v391, 1
        %v393 = vsel %vm392, %v387, %v389
        %v394 = vsel %vm392, %v389, %v387
        %395 = vset.pattern.permute.xlu0 0
        %396 = vperm.xlu0 %395, %v377
        %v397 = vpop.permute.xlu0 %396
        %v399 = vmul.f32 %v394, %v397
        %v400 = vmul.f32 %v393, %v397
        %v402 = vlaneseq
        %v403 = vshrl.u32 %v402, 7
        %v404 = vsub.s32 0, %v403
        %v405 = vrot.slane %v378, %v404
        %v406 = vlaneseq
        %v407 = vshrl.u32 %v406, 7
        %v408 = vsub.s32 4, %v407
        %v409 = vrot.slane %v378, %v408
        %v412 = vlaneseq
        %v413 = vshrl.u32 %v412, 7
        %v414 = vsub.s32 0, %v413
        %v415 = vrot.slane %v405, %v414
        %v416 = vlaneseq
        %v417 = vshrl.u32 %v416, 7
        %v418 = vsub.s32 0, %v417
        %v419 = vrot.slane %v409, %v418
        %v420 = vmul.f32 %v399, %v415
        %v421 = vmul.f32 %v400, %v419
        %v422 = vadd.f32 %v384, %v420
        %v423 = vadd.f32 %v385, %v421
        %424 = vrot.lane.b32.xlu0 %v375, 127
        %v425 = vpop.permute.xlu0 %424
        %426 = vrot.lane.b32.xlu0 %v376, 127
        %v427 = vpop.permute.xlu0 %426
        %vm428 = vcmp.lt.s32.totalorder %v391, 127
        %v429 = vsel %vm428, %v425, %v427
        %v430 = vsel %vm428, %v427, %v425
        %431 = vset.pattern.permute.xlu0 2
        %432 = vperm.xlu0 %431, %v377
        %v433 = vpop.permute.xlu0 %432
        %v435 = vmul.f32 %v429, %v433
        %v436 = vmul.f32 %v430, %v433
        %v437 = vlaneseq
        %v438 = vshrl.u32 %v437, 7
        %v439 = vsub.s32 2, %v438
        %v440 = vrot.slane %v378, %v439
        %v441 = vlaneseq
        %v442 = vshrl.u32 %v441, 7
        %v443 = vsub.s32 6, %v442
        %v444 = vrot.slane %v378, %v443
        %v447 = vlaneseq
        %v448 = vshrl.u32 %v447, 7
        %v449 = vsub.s32 2, %v448
        %v450 = vrot.slane %v440, %v449
        %v451 = vlaneseq
        %v452 = vshrl.u32 %v451, 7
        %v453 = vsub.s32 2, %v452
        %v454 = vrot.slane %v444, %v453
        %v455 = vmul.f32 %v435, %v450
        %v456 = vmul.f32 %v436, %v454
        %v457 = vadd.f32 %v422, %v455
        %v458 = vadd.f32 %v423, %v456
        %v459 = vld [vmem:[%s358] sm:$0xff]
        %461 = vset.pattern.permute.xlu0 0
        %462 = vperm.xlu0 %461, %v459
        %v463 = vpop.permute.xlu0 %462
        %v465 = vlaneseq
        %v466 = vshrl.u32 %v465, 7
        %v467 = vsub.s32 0, %v466
        %v468 = vrot.slane %v457, %v467
        %v469 = vlaneseq
        %v470 = vshrl.u32 %v469, 7
        %v471 = vsub.s32 0, %v470
        %v472 = vrot.slane %v458, %v471
        %v473 = vmul.f32 %v463, %v468
        %v474 = vmul.f32 %v463, %v472
        %475 = vset.pattern.permute.xlu0 1
        %476 = vperm.xlu0 %475, %v459
        %v477 = vpop.permute.xlu0 %476
        %v479 = vlaneseq
        %v480 = vshrl.u32 %v479, 7
        %v481 = vsub.s32 1, %v480
        %v482 = vrot.slane %v457, %v481
        %v483 = vlaneseq
        %v484 = vshrl.u32 %v483, 7
        %v485 = vsub.s32 1, %v484
        %v486 = vrot.slane %v458, %v485
        %v487 = vmul.f32 %v477, %v482
        %v488 = vmul.f32 %v477, %v486
        %v489 = vadd.f32 %v473, %v487
        %v490 = vadd.f32 %v474, %v488
        %491 = vset.pattern.permute.xlu0 2
        %492 = vperm.xlu0 %491, %v459
        %v493 = vpop.permute.xlu0 %492
        %v495 = vlaneseq
        %v496 = vshrl.u32 %v495, 7
        %v497 = vsub.s32 2, %v496
        %v498 = vrot.slane %v457, %v497
        %v499 = vlaneseq
        %v500 = vshrl.u32 %v499, 7
        %v501 = vsub.s32 2, %v500
        %v502 = vrot.slane %v458, %v501
        %v503 = vmul.f32 %v493, %v498
        %v504 = vmul.f32 %v493, %v502
        %v505 = vadd.f32 %v489, %v503
        %v506 = vadd.f32 %v490, %v504
        %507 = vset.pattern.permute.xlu0 3
        %508 = vperm.xlu0 %507, %v459
        %v509 = vpop.permute.xlu0 %508
        %v511 = vlaneseq
        %v512 = vshrl.u32 %v511, 7
        %v513 = vsub.s32 3, %v512
        %v514 = vrot.slane %v457, %v513
        %v515 = vlaneseq
        %v516 = vshrl.u32 %v515, 7
        %v517 = vsub.s32 3, %v516
        %v518 = vrot.slane %v458, %v517
        %v519 = vmul.f32 %v509, %v514
        %v520 = vmul.f32 %v509, %v518
        %v521 = vadd.f32 %v505, %v519
        %v522 = vadd.f32 %v506, %v520
        %523 = vset.pattern.permute.xlu0 4
        %524 = vperm.xlu0 %523, %v459
        %v525 = vpop.permute.xlu0 %524
        %v527 = vlaneseq
        %v528 = vshrl.u32 %v527, 7
        %v529 = vsub.s32 4, %v528
        %v530 = vrot.slane %v457, %v529
        %v531 = vlaneseq
        %v532 = vshrl.u32 %v531, 7
        %v533 = vsub.s32 4, %v532
        %v534 = vrot.slane %v458, %v533
        %v535 = vmul.f32 %v525, %v530
        %v536 = vmul.f32 %v525, %v534
        %v537 = vadd.f32 %v521, %v535
        %v538 = vadd.f32 %v522, %v536
        %539 = vset.pattern.permute.xlu0 5
        %540 = vperm.xlu0 %539, %v459
        %v541 = vpop.permute.xlu0 %540
        %v543 = vlaneseq
        %v544 = vshrl.u32 %v543, 7
        %v545 = vsub.s32 5, %v544
        %v546 = vrot.slane %v457, %v545
        %v547 = vlaneseq
        %v548 = vshrl.u32 %v547, 7
        %v549 = vsub.s32 5, %v548
        %v550 = vrot.slane %v458, %v549
        %v551 = vmul.f32 %v541, %v546
        %v552 = vmul.f32 %v541, %v550
        %v553 = vadd.f32 %v537, %v551
        %v554 = vadd.f32 %v538, %v552
        %555 = vset.pattern.permute.xlu0 6
        %556 = vperm.xlu0 %555, %v459
        %v557 = vpop.permute.xlu0 %556
        %v559 = vlaneseq
        %v560 = vshrl.u32 %v559, 7
        %v561 = vsub.s32 6, %v560
        %v562 = vrot.slane %v457, %v561
        %v563 = vlaneseq
        %v564 = vshrl.u32 %v563, 7
        %v565 = vsub.s32 6, %v564
        %v566 = vrot.slane %v458, %v565
        %v567 = vmul.f32 %v557, %v562
        %v568 = vmul.f32 %v557, %v566
        %v569 = vadd.f32 %v553, %v567
        %v570 = vadd.f32 %v554, %v568
        %571 = vset.pattern.permute.xlu0 7
        %572 = vperm.xlu0 %571, %v459
        %v573 = vpop.permute.xlu0 %572
        %v575 = vlaneseq
        %v576 = vshrl.u32 %v575, 7
        %v577 = vsub.s32 7, %v576
        %v578 = vrot.slane %v457, %v577
        %v579 = vlaneseq
        %v580 = vshrl.u32 %v579, 7
        %v581 = vsub.s32 7, %v580
        %v582 = vrot.slane %v458, %v581
        %v583 = vmul.f32 %v573, %v578
        %v584 = vmul.f32 %v573, %v582
        %v585 = vadd.f32 %v569, %v583
        %v586 = vadd.f32 %v570, %v584
        %v587 = vld [vmem:[%s362] sm:$0xff]
        %v588 = vld [vmem:[%s366] sm:$0xff]
        %v589 = vadd.f32 %v585, %v586
        %590 = vadd.xlane.f32.xlu0 %v589
        %v591 = vpop.xlane.xlu0 %590
        %v592 = vmul.f32 %v585, %v585
        %v593 = vmul.f32 %v586, %v586
        %v594 = vadd.f32 %v592, %v593
        %595 = vadd.xlane.f32.xlu0 %v594
        %v596 = vpop.xlane.xlu0 %595
        %v597 = vmul.f32 %v591, 0.00390625
        %v598 = vmul.f32 %v596, 0.00390625
        %v599 = vmul.f32 %v597, %v597
        %v600 = vsub.f32 %v598, %v599
        %v601 = vadd.f32 %v600, 1e-05
        %v602 = vrsqrt.pop %v601
        %v603 = vmul.f32 %v587, %v602
        %v604 = vmul.f32 %v597, %v603
        %v605 = vsub.f32 %v588, %v604
        %607 = vset.pattern.permute.xlu0 0
        %608 = vperm.xlu0 %607, %v603
        %v609 = vpop.permute.xlu0 %608
        %v611 = vmul.f32 %v585, %v609
        %v612 = vmul.f32 %v586, %v609
        %614 = vset.pattern.permute.xlu0 0
        %615 = vperm.xlu0 %614, %v605
        %v616 = vpop.permute.xlu0 %615
        %v618 = vadd.f32 %v611, %v616
        %v619 = vadd.f32 %v612, %v616
        %p620 = scmp.ne.s32.totalorder %s21, 1
        // Predicated region
        $region61: #{tpu_custom_call.1} parent=55 // pred_check
          %p621 = pneg %p620
        $region62: #{tpu_custom_call.1} parent=55 // pred_check_branch
          %623 = sbr.rel (%p621) target = $region64
        $region63: #{tpu_custom_call.1} parent=55 // pred_region
          %v624 = vmax.f32 %v618, 0.0
          %v625 = vmax.f32 %v619, 0.0
          %626 = vst [vmem:[#allocation2] sm:$0xff] %v624
          %627 = vst [vmem:[#allocation2 + $0x8] sm:$0xff] %v625
        $region64: #{tpu_custom_call.1} parent=55 // pred_fallthru
          _
        %p628 = scmp.eq.s32.totalorder %s21, 1
        // Predicated region
        $region65: #{tpu_custom_call.1} parent=55 // pred_check
          %p629 = pneg %p628
        $region66: #{tpu_custom_call.1} parent=55 // pred_check_branch
          %631 = sbr.rel (%p629) target = $region68
        $region67: #{tpu_custom_call.1} parent=55 // pred_region
          %v632 = vld [vmem:[%s6] sm:$0xff]
          %v633 = vld [vmem:[%s1] sm:$0xff]
          %v634 = vld [vmem:[%s1 + $0x8] sm:$0xff]
          %636 = vset.pattern.permute.xlu0 0
          %637 = vperm.xlu0 %636, %v632
          %v638 = vpop.permute.xlu0 %637
          %v640 = vlaneseq
          %v641 = vshrl.u32 %v640, 7
          %v642 = vsub.s32 0, %v641
          %v643 = vrot.slane %v633, %v642
          %v644 = vlaneseq
          %v645 = vshrl.u32 %v644, 7
          %v646 = vsub.s32 0, %v645
          %v647 = vrot.slane %v634, %v646
          %v648 = vmul.f32 %v638, %v643
          %v649 = vmul.f32 %v638, %v647
          %650 = vset.pattern.permute.xlu0 1
          %651 = vperm.xlu0 %650, %v632
          %v652 = vpop.permute.xlu0 %651
          %v654 = vlaneseq
          %v655 = vshrl.u32 %v654, 7
          %v656 = vsub.s32 1, %v655
          %v657 = vrot.slane %v633, %v656
          %v658 = vlaneseq
          %v659 = vshrl.u32 %v658, 7
          %v660 = vsub.s32 1, %v659
          %v661 = vrot.slane %v634, %v660
          %v662 = vmul.f32 %v652, %v657
          %v663 = vmul.f32 %v652, %v661
          %v664 = vadd.f32 %v648, %v662
          %v665 = vadd.f32 %v649, %v663
          %666 = vset.pattern.permute.xlu0 2
          %667 = vperm.xlu0 %666, %v632
          %v668 = vpop.permute.xlu0 %667
          %v670 = vlaneseq
          %v671 = vshrl.u32 %v670, 7
          %v672 = vsub.s32 2, %v671
          %v673 = vrot.slane %v633, %v672
          %v674 = vlaneseq
          %v675 = vshrl.u32 %v674, 7
          %v676 = vsub.s32 2, %v675
          %v677 = vrot.slane %v634, %v676
          %v678 = vmul.f32 %v668, %v673
          %v679 = vmul.f32 %v668, %v677
          %v680 = vadd.f32 %v664, %v678
          %v681 = vadd.f32 %v665, %v679
          %682 = vset.pattern.permute.xlu0 3
          %683 = vperm.xlu0 %682, %v632
          %v684 = vpop.permute.xlu0 %683
          %v686 = vlaneseq
          %v687 = vshrl.u32 %v686, 7
          %v688 = vsub.s32 3, %v687
          %v689 = vrot.slane %v633, %v688
          %v690 = vlaneseq
          %v691 = vshrl.u32 %v690, 7
          %v692 = vsub.s32 3, %v691
          %v693 = vrot.slane %v634, %v692
          %v694 = vmul.f32 %v684, %v689
          %v695 = vmul.f32 %v684, %v693
          %v696 = vadd.f32 %v680, %v694
          %v697 = vadd.f32 %v681, %v695
          %698 = vset.pattern.permute.xlu0 4
          %699 = vperm.xlu0 %698, %v632
          %v700 = vpop.permute.xlu0 %699
          %v702 = vlaneseq
          %v703 = vshrl.u32 %v702, 7
          %v704 = vsub.s32 4, %v703
          %v705 = vrot.slane %v633, %v704
          %v706 = vlaneseq
          %v707 = vshrl.u32 %v706, 7
          %v708 = vsub.s32 4, %v707
          %v709 = vrot.slane %v634, %v708
          %v710 = vmul.f32 %v700, %v705
          %v711 = vmul.f32 %v700, %v709
          %v712 = vadd.f32 %v696, %v710
          %v713 = vadd.f32 %v697, %v711
          %714 = vset.pattern.permute.xlu0 5
          %715 = vperm.xlu0 %714, %v632
          %v716 = vpop.permute.xlu0 %715
          %v718 = vlaneseq
          %v719 = vshrl.u32 %v718, 7
          %v720 = vsub.s32 5, %v719
          %v721 = vrot.slane %v633, %v720
          %v722 = vlaneseq
          %v723 = vshrl.u32 %v722, 7
          %v724 = vsub.s32 5, %v723
          %v725 = vrot.slane %v634, %v724
          %v726 = vmul.f32 %v716, %v721
          %v727 = vmul.f32 %v716, %v725
          %v728 = vadd.f32 %v712, %v726
          %v729 = vadd.f32 %v713, %v727
          %730 = vset.pattern.permute.xlu0 6
          %731 = vperm.xlu0 %730, %v632
          %v732 = vpop.permute.xlu0 %731
          %v734 = vlaneseq
          %v735 = vshrl.u32 %v734, 7
          %v736 = vsub.s32 6, %v735
          %v737 = vrot.slane %v633, %v736
          %v738 = vlaneseq
          %v739 = vshrl.u32 %v738, 7
          %v740 = vsub.s32 6, %v739
          %v741 = vrot.slane %v634, %v740
          %v742 = vmul.f32 %v732, %v737
          %v743 = vmul.f32 %v732, %v741
          %v744 = vadd.f32 %v728, %v742
          %v745 = vadd.f32 %v729, %v743
          %746 = vset.pattern.permute.xlu0 7
          %747 = vperm.xlu0 %746, %v632
          %v748 = vpop.permute.xlu0 %747
          %v750 = vlaneseq
          %v751 = vshrl.u32 %v750, 7
          %v752 = vsub.s32 7, %v751
          %v753 = vrot.slane %v633, %v752
          %v754 = vlaneseq
          %v755 = vshrl.u32 %v754, 7
          %v756 = vsub.s32 7, %v755
          %v757 = vrot.slane %v634, %v756
          %v758 = vmul.f32 %v748, %v753
          %v759 = vmul.f32 %v748, %v757
          %v760 = vadd.f32 %v744, %v758
          %v761 = vadd.f32 %v745, %v759
          %v762 = vld [vmem:[%s7] sm:$0xff]
          %v763 = vld [vmem:[%s8] sm:$0xff]
          %v764 = vadd.f32 %v760, %v761
          %765 = vadd.xlane.f32.xlu0 %v764
          %v766 = vpop.xlane.xlu0 %765
          %v767 = vmul.f32 %v760, %v760
          %v768 = vmul.f32 %v761, %v761
          %v769 = vadd.f32 %v767, %v768
          %770 = vadd.xlane.f32.xlu0 %v769
          %v771 = vpop.xlane.xlu0 %770
          %v772 = vmul.f32 %v766, 0.00390625
          %v773 = vmul.f32 %v771, 0.00390625
          %v774 = vmul.f32 %v772, %v772
          %v775 = vsub.f32 %v773, %v774
          %v776 = vadd.f32 %v775, 1e-05
          %v777 = vrsqrt.pop %v776
          %v778 = vmul.f32 %v762, %v777
          %v779 = vmul.f32 %v772, %v778
          %v780 = vsub.f32 %v763, %v779
          %782 = vset.pattern.permute.xlu0 0
          %783 = vperm.xlu0 %782, %v778
          %v784 = vpop.permute.xlu0 %783
          %v786 = vmul.f32 %v760, %v784
          %v787 = vmul.f32 %v761, %v784
          %789 = vset.pattern.permute.xlu0 0
          %790 = vperm.xlu0 %789, %v780
          %v791 = vpop.permute.xlu0 %790
          %v793 = vadd.f32 %v786, %v791
          %v794 = vadd.f32 %v787, %v791
          %v795 = vadd.f32 %v618, %v793
          %v796 = vadd.f32 %v619, %v794
          %v797 = vmax.f32 %v795, 0.0
          %v798 = vmax.f32 %v796, 0.0
          %799 = vst [vmem:[#allocation3] sm:$0xff] %v797
          %800 = vst [vmem:[#allocation3 + $0x8] sm:$0xff] %v798
        $region68: #{tpu_custom_call.1} parent=55 // pred_fallthru
          _
        // Predicated region
        $region69: #{tpu_custom_call.1} parent=55 // pred_check
          %p801 = pneg %p243
        $region70: #{tpu_custom_call.1} parent=55 // pred_check_branch
          %803 = sbr.rel (%p801) target = $region72
        $region71: #{tpu_custom_call.1} parent=55 // pred_region
          %s805 = ssub.s32 256, 256
          %806 = vsyncadd [#allocation4], %s805
          %s808 = sshll.u32 [#allocation3], 4
          %s809 = int_to_ptr.vmem [resolvable:$true] %s808
          %811 = dma.vmem_to_hbm [thread:$0]  %s809, 256, %s9, [#allocation4]
        $region72: #{tpu_custom_call.1} parent=55 // pred_fallthru
          _
        // Predicated region
        $region73: #{tpu_custom_call.1} parent=55 // pred_check
          %p812 = pneg %p243
        $region74: #{tpu_custom_call.1} parent=55 // pred_check_branch
          %814 = sbr.rel (%p812) target = $region76
        $region75: #{tpu_custom_call.1} parent=55 // pred_region
          %815 = dma.done [#allocation4], 256
        $region76: #{tpu_custom_call.1} parent=55 // pred_fallthru
          _
      $region56: #{tpu_custom_call.1} parent=5 // pred_fallthru
        _
      %p816 = scmp.le.s32.totalorder 2, %s16
      // Predicated region
      $region77: #{tpu_custom_call.1} parent=5 // pred_check
        %p817 = pneg %p816
      $region78: #{tpu_custom_call.1} parent=5 // pred_check_branch
        %819 = sbr.rel (%p817) target = $region80
      $region79: #{tpu_custom_call.1} parent=5 // pred_region
        %s820 = ssub.s32 %s16, 2
      $region80: #{tpu_custom_call.1} parent=5 // pred_fallthru
        _
    $region6: #{tpu_custom_call.1} parent=1 // loop_footer
      %s20 = sadd.s32 1, %s16
    $region7: #{tpu_custom_call.1} parent=1 // loop_footer_branch
      %15 = sbr.rel target = $region3
    $region8: #{tpu_custom_call.1} parent=1 // loop_exit
      _
    %821 = vsyncpa [#allocation4], 1
    %s822 = scalar_lea.sflag [#allocation4], 1
    %823 = vsyncpa %s822, 1

</llo_original>
